<compile_context>
chip_gen: v7x
topology: tpu7x:2x2x1
jax: 0.10.0
libtpu: 0.0.40
codegen_flags: <defaults>
</compile_context>

<pallas_src>
import functools
import numpy as np
import jax
import jax.numpy as jnp
from jax.experimental import pallas as pl
from jax.experimental.pallas import tpu as pltpu

NUM_ORGAN = 13
ACT_DTYPE = jnp.bfloat16          # network activations / weights fed to the MXU
TM = 2048                         # M tile for the generic matmul kernel
VMEM_LIMIT = 48 * 1024 * 1024     # raised scoped-VMEM budget (<= v7x 64 MiB physical)


def _round_up(x, m):
    return (x + m - 1) // m * m


# ---------------------------------------------------------------------------
# Fused 3x3x3 (dilated) conv + bias + PReLU  (one pallas_call per layer)
# ---------------------------------------------------------------------------

@functools.lru_cache(maxsize=None)
def _conv3x3_call(Nb, D, HW, Cin, Cout, dil):
    """grid = (Nb, D, 3 D-taps); 9 (H,W)-taps folded into K = 9*Cin.

    The D-tap shift (a*dil rows in the zero-padded volume) is applied by the input
    index_map, so the DMA itself does the shift.  Taps accumulate into a VMEM f32
    scratch; bias + PReLU + the bf16 store happen only on the last tap.
    """
    K = 9 * Cin

    def kernel(x_ref, w_ref, b_ref, a_ref, o_ref, acc_ref):
        tap = pl.program_id(2)

        @pl.when(tap == 0)
        def _init():
            acc_ref[...] = jnp.zeros_like(acc_ref)

        acc_ref[...] += jnp.dot(x_ref[0, 0], w_ref[0],
                                preferred_element_type=jnp.float32)

        @pl.when(tap == pl.num_programs(2) - 1)
        def _finish():
            y = acc_ref[...] + b_ref[...]
            y = jnp.where(y >= 0, y, a_ref[...] * y)      # per-channel PReLU
            o_ref[0, 0] = y.astype(o_ref.dtype)

    return jax.jit(pl.pallas_call(
        kernel,
        out_shape=jax.ShapeDtypeStruct((Nb, D, HW, Cout), ACT_DTYPE),
        grid=(Nb, D, 3),
        in_specs=[
            # shifted (d + a*dil) padded-D row of the W/H-folded volume
            pl.BlockSpec((1, 1, HW, K), lambda n, d, a: (n, d + a * dil, 0, 0)),
            pl.BlockSpec((1, K, Cout), lambda n, d, a: (a, 0, 0)),
            pl.BlockSpec((1, Cout), lambda n, d, a: (0, 0)),
            pl.BlockSpec((1, Cout), lambda n, d, a: (0, 0)),
        ],
        out_specs=pl.BlockSpec((1, 1, HW, Cout), lambda n, d, a: (n, d, 0, 0)),
        scratch_shapes=[pltpu.VMEM((HW, Cout), jnp.float32)],
        compiler_params=pltpu.CompilerParams(
            dimension_semantics=("parallel", "parallel", "arbitrary"),
            vmem_limit_bytes=VMEM_LIMIT,
        ),
    ))


def conv3d_prelu(x, w, b, alpha, dil):
    """3x3x3 stride-1 'same' (optionally dilated) conv + PReLU, NDHWC."""
    Nb, D, H, W, Cin = x.shape
    Cout = w.shape[0]
    p = dil
    xp = jnp.pad(x.astype(ACT_DTYPE), ((0, 0), (p, p), (p, p), (p, p), (0, 0)))
    # fold the 9 (H, W) taps into the channel dim -> (Nb, Dp, H*W, 9*Cin)
    xf = jnp.concatenate(
        [xp[:, :, bb * dil:bb * dil + H, cc * dil:cc * dil + W, :]
         for bb in range(3) for cc in range(3)], axis=-1)
    xf = xf.reshape(Nb, D + 2 * dil, H * W, 9 * Cin)
    # weights -> (a, 9*Cin, Cout) with K index = (b*3 + c)*Cin + i
    wk = jnp.transpose(w, (2, 3, 4, 1, 0)).reshape(3, 9 * Cin, Cout).astype(ACT_DTYPE)
    fn = _conv3x3_call(Nb, D, H * W, Cin, Cout, dil)
    y = fn(xf, wk,
           b.reshape(1, Cout).astype(jnp.float32),
           alpha.reshape(1, Cout).astype(jnp.float32))
    return y.reshape(Nb, D, H, W, Cout)


# ---------------------------------------------------------------------------
# Generic tiled matmul kernel (down/up convs, 1x1 conv + softmax, interpolation)
# ---------------------------------------------------------------------------

@functools.lru_cache(maxsize=None)
def _linear_call(Mp, K, N, has_bias, has_alpha, softmax, tm, out_dtype_name):
    out_dtype = jnp.dtype(out_dtype_name)

    def kernel(*refs):
        x_ref, w_ref = refs[0], refs[1]
        i = 2
        b_ref = a_ref = None
        if has_bias:
            b_ref = refs[i]; i += 1
        if has_alpha:
            a_ref = refs[i]; i += 1
        o_ref = refs[i]
        y = jnp.dot(x_ref[...], w_ref[...], preferred_element_type=jnp.float32)
        if has_bias:
            y = y + b_ref[...]
        if has_alpha:
            y = jnp.where(y >= 0, y, a_ref[...] * y)       # per-channel PReLU
        if softmax:
            # Exact normalization (approx reciprocal drifted the channel sums).
            y = y - jnp.max(y, axis=-1, keepdims=True)
            e = jnp.exp(y)
            y = e / jnp.sum(e, axis=-1, keepdims=True)
        o_ref[...] = y.astype(o_ref.dtype)

    in_specs = [pl.BlockSpec((tm, K), lambda i: (i, 0)),
                pl.BlockSpec((K, N), lambda i: (0, 0))]
    if has_bias:
        in_specs.append(pl.BlockSpec((1, N), lambda i: (0, 0)))
    if has_alpha:
        in_specs.append(pl.BlockSpec((1, N), lambda i: (0, 0)))

    return jax.jit(pl.pallas_call(
        kernel,
        out_shape=jax.ShapeDtypeStruct((Mp, N), out_dtype),
        grid=(Mp // tm,),
        in_specs=in_specs,
        out_specs=pl.BlockSpec((tm, N), lambda i: (i, 0)),
        compiler_params=pltpu.CompilerParams(
            dimension_semantics=("parallel",),
            vmem_limit_bytes=VMEM_LIMIT,
        ),
    ))


def pallas_linear(x, w, *, bias=None, alpha=None, softmax=False,
                  precise=False, tm=TM):
    """out = act(x @ w [+ bias]);  bf16 MXU inputs unless `precise`."""
    cdt = jnp.float32 if precise else ACT_DTYPE
    out_dtype = jnp.float32 if (softmax or precise) else ACT_DTYPE
    x = x.astype(cdt)
    w = w.astype(cdt)
    M, K = x.shape
    N = w.shape[1]
    tm = int(min(tm, _round_up(M, 8)))
    Mp = _round_up(M, tm)
    if Mp != M:
        x = jnp.pad(x, ((0, Mp - M), (0, 0)))
    args = [x, w]
    if bias is not None:
        args.append(bias.reshape(1, N).astype(jnp.float32))
    if alpha is not None:
        args.append(alpha.reshape(1, N).astype(jnp.float32))
    fn = _linear_call(Mp, K, N, bias is not None, alpha is not None,
                      softmax, tm, jnp.dtype(out_dtype).name)
    out = fn(*args)
    return out[:M] if Mp != M else out


# ---------------------------------------------------------------------------
# Down / up convs, 1x1 conv + softmax, trilinear interpolation
# ---------------------------------------------------------------------------

def conv_down(x, prm):
    """Conv3d(kernel=2, stride=2) + PReLU (non-overlapping patch matmul)."""
    Nb, D, H, W, Cin = x.shape
    Cout = prm["w"].shape[0]
    xr = x.reshape(Nb, D // 2, 2, H // 2, 2, W // 2, 2, Cin)
    xr = xr.transpose(0, 1, 3, 5, 2, 4, 6, 7).reshape(-1, 8 * Cin)
    wr = prm["w"].transpose(2, 3, 4, 1, 0).reshape(8 * Cin, Cout)
    y = pallas_linear(xr, wr, bias=prm["b"], alpha=prm["alpha"])
    return y.reshape(Nb, D // 2, H // 2, W // 2, Cout)


def conv_up(x, prm):
    """ConvTranspose3d(kernel=2, stride=2) + PReLU (matmul then interleave)."""
    # TODO(synk): fold the 2x2x2 interleave into the output index_map to avoid the
    # extra full-volume transpose pass.
    Nb, D, H, W, Cin = x.shape
    Cout = prm["w"].shape[1]
    wr = prm["w"].transpose(0, 2, 3, 4, 1).reshape(Cin, 8 * Cout)
    y = pallas_linear(x.reshape(-1, Cin), wr,
                      bias=jnp.tile(prm["b"], 8), alpha=jnp.tile(prm["alpha"], 8))
    y = y.reshape(Nb, D, H, W, 2, 2, 2, Cout)
    y = y.transpose(0, 1, 4, 2, 5, 3, 6, 7).reshape(Nb, 2 * D, 2 * H, 2 * W, Cout)
    return y


def map_layer(x, prm):
    """1x1x1 conv + Softmax over channels (softmax fused in the kernel, f32 out)."""
    Nb, D, H, W, Cin = x.shape
    Cout = prm["w"].shape[0]
    w = prm["w"][:, :, 0, 0, 0].T
    y = pallas_linear(x.reshape(-1, Cin), w, bias=prm["b"], softmax=True)
    return y.reshape(Nb, D, H, W, Cout)


@functools.lru_cache(maxsize=None)
def _interp_matrix(in_size, out_size):
    """1-D linear interpolation matrix (align_corners=False, PyTorch convention)."""
    scale = in_size / out_size
    j = np.arange(out_size)
    x = np.maximum((j + 0.5) * scale - 0.5, 0.0)
    i0 = np.minimum(np.floor(x).astype(np.int64), in_size - 1)
    i1 = np.minimum(i0 + 1, in_size - 1)
    w1 = (x - i0).astype(np.float32)
    w0 = (1.0 - w1).astype(np.float32)
    m = np.zeros((in_size, out_size), np.float32)
    m[i0, j] += w0
    m[i1, j] += w1
    return jnp.asarray(m)


def interp_axis(x, axis, out_size, precise):
    in_size = x.shape[axis]
    if in_size == out_size:
        return x
    m = _interp_matrix(in_size, out_size)
    xm = jnp.moveaxis(x, axis, -1)
    lead = xm.shape[:-1]
    y = pallas_linear(xm.reshape(-1, in_size), m, precise=precise)
    return jnp.moveaxis(y.reshape(lead + (out_size,)), -1, axis)


def interp_trilinear(x, out_dhw, precise=False):
    """F.interpolate(..., mode='trilinear') as three separable Pallas matmuls."""
    for axis, osz in zip((1, 2, 3), out_dhw):
        x = interp_axis(x, axis, osz, precise)
    return x


# ---------------------------------------------------------------------------
# Parameters (deterministic synthetic init) and forward pass
# ---------------------------------------------------------------------------

def init_params(key):
    keys = iter(jax.random.split(key, 128))

    def nk():
        return next(keys)

    def conv_w(cout, cin, k):
        fan = cin * k ** 3
        w = jax.random.normal(nk(), (cout, cin, k, k, k), jnp.float32) / np.sqrt(fan)
        b = jax.random.normal(nk(), (cout,), jnp.float32) * 0.01
        return w, b

    def convt_w(cin, cout, k):
        fan = cin * k ** 3
        w = jax.random.normal(nk(), (cin, cout, k, k, k), jnp.float32) / np.sqrt(fan)
        b = jax.random.normal(nk(), (cout,), jnp.float32) * 0.01
        return w, b

    def block(cout, cin, dil=1):
        w, b = conv_w(cout, cin, 3)
        return dict(w=w, b=b, alpha=jnp.full((cout,), 0.25, jnp.float32), dil=dil)

    def updown(cout, cin, transpose=False):
        w, b = convt_w(cin, cout, 2) if transpose else conv_w(cout, cin, 2)
        return dict(w=w, b=b, alpha=jnp.full((cout,), 0.25, jnp.float32))

    P = {}
    P["enc1"] = [block(16, 1)]
    P["enc2"] = [block(32, 32), block(32, 32)]
    P["enc3"] = [block(64, 64, 1), block(64, 64, 2), block(64, 64, 4)]
    P["enc4"] = [block(128, 128, 3), block(128, 128, 4), block(128, 128, 5)]
    P["dec1"] = [block(256, 128), block(256, 256), block(256, 256)]
    P["dec2"] = [block(128, 192), block(128, 128), block(128, 128)]
    P["dec3"] = [block(64, 96), block(64, 64)]
    P["dec4"] = [block(32, 48)]
    P["down1"] = updown(32, 16)
    P["down2"] = updown(64, 32)
    P["down3"] = updown(128, 64)
    P["down4"] = [block(256, 128)]
    P["up2"] = updown(128, 256, transpose=True)
    P["up3"] = updown(64, 128, transpose=True)
    P["up4"] = updown(32, 64, transpose=True)
    wm, bm = conv_w(NUM_ORGAN + 1, 32, 1)
    P["map"] = dict(w=wm, b=bm)
    return P


def run_blocks(x, blocks):
    for blk in blocks:
        x = conv3d_prelu(x, blk["w"], blk["b"], blk["alpha"], blk["dil"])
    return x


def resunet_forward(P, x):
    # F.dropout(..., training=False) is the identity everywhere below.
    long1 = run_blocks(x, P["enc1"]) + x          # 1-ch input broadcast over 16 ch
    short1 = conv_down(long1, P["down1"])
    long2 = run_blocks(short1, P["enc2"]) + short1
    short2 = conv_down(long2, P["down2"])
    long3 = run_blocks(short2, P["enc3"]) + short2
    short3 = conv_down(long3, P["down3"])
    long4 = run_blocks(short3, P["enc4"]) + short3
    short4 = run_blocks(long4, P["down4"])
    out = run_blocks(long4, P["dec1"]) + short4
    short6 = conv_up(out, P["up2"])
    out = run_blocks(jnp.concatenate([short6, long3], axis=-1), P["dec2"]) + short6
    short7 = conv_up(out, P["up3"])
    out = run_blocks(jnp.concatenate([short7, long2], axis=-1), P["dec3"]) + short7
    short8 = conv_up(out, P["up4"])
    out = run_blocks(jnp.concatenate([short8, long1], axis=-1), P["dec4"]) + short8
    out = map_layer(out, P["map"])
    return out


def net_forward(P, inputs_ncdhw, mid_dhw=(48, 128, 128), out_dhw=(48, 256, 256)):
    """Net.forward: NCDHW in -> NCDHW out.  Defaults match the original module;
    the smoke test below passes smaller mid/out sizes to keep runtime bounded."""
    x = jnp.transpose(inputs_ncdhw, (0, 2, 3, 4, 1)).astype(jnp.float32)  # -> NDHWC
    x = interp_trilinear(x, mid_dhw, precise=True)   # cheap (1 channel), f32 fidelity
    x = x.astype(ACT_DTYPE)
    y = resunet_forward(P, x)                        # f32 channel probabilities
    y = interp_trilinear(y, out_dhw, precise=True)
    return jnp.transpose(y, (0, 4, 1, 2, 3))         # -> NCDHW


if __name__ == "__main__":
    root = jax.random.PRNGKey(0)
    pkey, dkey = jax.random.split(root)
    params = init_params(pkey)

    # Small NCDHW input; small internal resolution (16,32,32) and output (16,64,64)
    # keep the same network structure/semantics at test-friendly sizes.
    x = jax.random.normal(dkey, (1, 1, 8, 32, 32), jnp.float32)

    mid_dhw = (16, 32, 32)
    out_dhw = (16, 64, 64)
    out = net_forward(params, x, mid_dhw=mid_dhw, out_dhw=out_dhw)
    out = jax.block_until_ready(out)

    assert out.shape == (1, NUM_ORGAN + 1) + out_dhw, out.shape
    assert bool(jnp.all(jnp.isfinite(out)))
    # softmax (exact divide) then f32 trilinear upsample => channel probs sum to ~1
    csum = jnp.sum(out.astype(jnp.float32), axis=1)
    assert bool(jnp.max(jnp.abs(csum - 1.0)) < 5e-3), float(jnp.max(jnp.abs(csum - 1.0)))

    print("KERNEL_OK")
</pallas_src>

<mosaic_0001>
module attributes {stable_mosaic.version = 11 : i64} {
  func.func @kernel(%arg0: i32, %arg1: memref<1024x8xf32, #tpu.memory_space<vmem>>, %arg2: memref<8x16xf32, #tpu.memory_space<vmem>>, %arg3: memref<1024x16xf32, #tpu.memory_space<vmem>>) attributes {dimension_semantics = [#tpu.dimension_semantics<parallel>], iteration_bounds = array<i64: 1>, scalar_prefetch = 0 : i64, scratch_operands = 0 : i64, tpu.core_type = #tpu.core_type<tc>, window_params = [{transform_indices = @transform_0, window_bounds = array<i64: 1024, 8>}, {pipeline_mode = #tpu.pipeline_mode<synchronous>, transform_indices = @transform_1, window_bounds = array<i64: 8, 16>}, {transform_indices = @transform_2, window_bounds = array<i64: 1024, 16>}]} {
    %c0 = arith.constant 0 : index
    %c0_0 = arith.constant 0 : index
    %0 = vector.load %arg1[%c0, %c0_0] : memref<1024x8xf32, #tpu.memory_space<vmem>>, vector<1024x8xf32>
    %c0_1 = arith.constant 0 : index
    %c0_2 = arith.constant 0 : index
    %1 = vector.load %arg2[%c0_1, %c0_2] : memref<8x16xf32, #tpu.memory_space<vmem>>, vector<8x16xf32>
    %cst = arith.constant dense<0.000000e+00> : vector<1024x16xf32>
    %2 = tpu.matmul %0, %1, %cst {dimension_numbers = #tpu.dot_dimension_numbers<[1], [0], [0], [1], [0, 0, 1, 1], [], []>} : vector<1024x8xf32>, vector<8x16xf32>, vector<1024x16xf32> -> vector<1024x16xf32>
    %c0_3 = arith.constant 0 : index
    %c0_4 = arith.constant 0 : index
    %3 = vector.load %arg3[%c0_3, %c0_4] : memref<1024x16xf32, #tpu.memory_space<vmem>>, vector<1024x16xf32>
    tpu.vector_store %arg3[%c0_3, %c0_4], %2 {strides = array<i32>} : memref<1024x16xf32, #tpu.memory_space<vmem>>, vector<1024x16xf32>,
    return
  }
  func.func @transform_0(%arg0: i32) -> (i32, i32) {
    %c0_i32 = arith.constant 0 : i32
    %c0_i32_0 = arith.constant 0 : i32
    return %arg0, %c0_i32 : i32, i32
  }
  func.func @transform_1(%arg0: i32) -> (i32, i32) {
    %c0_i32 = arith.constant 0 : i32
    %c0_i32_0 = arith.constant 0 : i32
    %c0_i32_1 = arith.constant 0 : i32
    return %c0_i32, %c0_i32_0 : i32, i32
  }
  func.func @transform_2(%arg0: i32) -> (i32, i32) {
    %c0_i32 = arith.constant 0 : i32
    %c0_i32_0 = arith.constant 0 : i32
    return %arg0, %c0_i32 : i32, i32
  }
}

</mosaic_0001>

<llo_original>
// kernel: tpu_custom_call.1
$region0: #{tpu_custom_call.1}
  #allocation0 [shape = 'u32[]', space=smem, size = 0x4, offset = 0x4, fixed_abs, tag = 'smem constant byte address 0x4 - core index']
  #allocation1 [shape = 'u32[144,128]{1,0:T(1,128)}', space=vmem, size = 0x12000, scoped, tag = 'internal scratch']
  %s0 = inlined_call_operand.vmem [shape: f32[1024,8], index: 0, kind: input, shape index: {}]
  %s1 = inlined_call_operand.vmem [shape: f32[8,16], index: 1, kind: input, shape index: {}]
  %s2 = inlined_call_operand.vmem [shape: f32[1024,16], index: 2, kind: output, shape index: {}]
  %s3 = sld [smem:[#allocation0]]
  $region18: #{tpu_custom_call.1} parent=0
    _
  %s5 = ssub.s32 1, %s3
  %s6 = scalar_select 0, %s5, %s3
  // Predicated region
  $region2: #{tpu_custom_call.1} parent=0 // pred_check
    _
  $region3: #{tpu_custom_call.1} parent=0 // pred_check_branch
    %8 = sbr.rel (0) target = $region5
  $region4: #{tpu_custom_call.1} parent=0 // pred_region
    _
  $region5: #{tpu_custom_call.1} parent=0 // pred_fallthru
    _
  // Predicated region
  $region6: #{tpu_custom_call.1} parent=0 // pred_check
    _
  $region7: #{tpu_custom_call.1} parent=0 // pred_check_branch
    %10 = sbr.rel (0) target = $region9
  $region8: #{tpu_custom_call.1} parent=0 // pred_region
    _
  $region9: #{tpu_custom_call.1} parent=0 // pred_fallthru
    _
  %v11 = vld [vmem:[%s0] sm:$0xff]
  %v12 = vld [vmem:[%s0 + $0x8] sm:$0xff]
  %v13 = vld [vmem:[%s0 + $0x10] sm:$0xff]
  %v14 = vld [vmem:[%s0 + $0x18] sm:$0xff]
  %v15 = vld [vmem:[%s0 + $0x20] sm:$0xff]
  %v16 = vld [vmem:[%s0 + $0x28] sm:$0xff]
  %v17 = vld [vmem:[%s0 + $0x30] sm:$0xff]
  %v18 = vld [vmem:[%s0 + $0x38] sm:$0xff]
  %v19 = vld [vmem:[%s0 + $0x40] sm:$0xff]
  %v20 = vld [vmem:[%s0 + $0x48] sm:$0xff]
  %v21 = vld [vmem:[%s0 + $0x50] sm:$0xff]
  %v22 = vld [vmem:[%s0 + $0x58] sm:$0xff]
  %v23 = vld [vmem:[%s0 + $0x60] sm:$0xff]
  %v24 = vld [vmem:[%s0 + $0x68] sm:$0xff]
  %v25 = vld [vmem:[%s0 + $0x70] sm:$0xff]
  %v26 = vld [vmem:[%s0 + $0x78] sm:$0xff]
  %v27 = vld [vmem:[%s0 + $0x80] sm:$0xff]
  %v28 = vld [vmem:[%s0 + $0x88] sm:$0xff]
  %v29 = vld [vmem:[%s0 + $0x90] sm:$0xff]
  %v30 = vld [vmem:[%s0 + $0x98] sm:$0xff]
  %v31 = vld [vmem:[%s0 + $0xa0] sm:$0xff]
  %v32 = vld [vmem:[%s0 + $0xa8] sm:$0xff]
  %v33 = vld [vmem:[%s0 + $0xb0] sm:$0xff]
  %v34 = vld [vmem:[%s0 + $0xb8] sm:$0xff]
  %v35 = vld [vmem:[%s0 + $0xc0] sm:$0xff]
  %v36 = vld [vmem:[%s0 + $0xc8] sm:$0xff]
  %v37 = vld [vmem:[%s0 + $0xd0] sm:$0xff]
  %v38 = vld [vmem:[%s0 + $0xd8] sm:$0xff]
  %v39 = vld [vmem:[%s0 + $0xe0] sm:$0xff]
  %v40 = vld [vmem:[%s0 + $0xe8] sm:$0xff]
  %v41 = vld [vmem:[%s0 + $0xf0] sm:$0xff]
  %v42 = vld [vmem:[%s0 + $0xf8] sm:$0xff]
  %v43 = vld [vmem:[%s0 + $0x100] sm:$0xff]
  %v44 = vld [vmem:[%s0 + $0x108] sm:$0xff]
  %v45 = vld [vmem:[%s0 + $0x110] sm:$0xff]
  %v46 = vld [vmem:[%s0 + $0x118] sm:$0xff]
  %v47 = vld [vmem:[%s0 + $0x120] sm:$0xff]
  %v48 = vld [vmem:[%s0 + $0x128] sm:$0xff]
  %v49 = vld [vmem:[%s0 + $0x130] sm:$0xff]
  %v50 = vld [vmem:[%s0 + $0x138] sm:$0xff]
  %v51 = vld [vmem:[%s0 + $0x140] sm:$0xff]
  %v52 = vld [vmem:[%s0 + $0x148] sm:$0xff]
  %v53 = vld [vmem:[%s0 + $0x150] sm:$0xff]
  %v54 = vld [vmem:[%s0 + $0x158] sm:$0xff]
  %v55 = vld [vmem:[%s0 + $0x160] sm:$0xff]
  %v56 = vld [vmem:[%s0 + $0x168] sm:$0xff]
  %v57 = vld [vmem:[%s0 + $0x170] sm:$0xff]
  %v58 = vld [vmem:[%s0 + $0x178] sm:$0xff]
  %v59 = vld [vmem:[%s0 + $0x180] sm:$0xff]
  %v60 = vld [vmem:[%s0 + $0x188] sm:$0xff]
  %v61 = vld [vmem:[%s0 + $0x190] sm:$0xff]
  %v62 = vld [vmem:[%s0 + $0x198] sm:$0xff]
  %v63 = vld [vmem:[%s0 + $0x1a0] sm:$0xff]
  %v64 = vld [vmem:[%s0 + $0x1a8] sm:$0xff]
  %v65 = vld [vmem:[%s0 + $0x1b0] sm:$0xff]
  %v66 = vld [vmem:[%s0 + $0x1b8] sm:$0xff]
  %v67 = vld [vmem:[%s0 + $0x1c0] sm:$0xff]
  %v68 = vld [vmem:[%s0 + $0x1c8] sm:$0xff]
  %v69 = vld [vmem:[%s0 + $0x1d0] sm:$0xff]
  %v70 = vld [vmem:[%s0 + $0x1d8] sm:$0xff]
  %v71 = vld [vmem:[%s0 + $0x1e0] sm:$0xff]
  %v72 = vld [vmem:[%s0 + $0x1e8] sm:$0xff]
  %v73 = vld [vmem:[%s0 + $0x1f0] sm:$0xff]
  %v74 = vld [vmem:[%s0 + $0x1f8] sm:$0xff]
  %v75 = vld [vmem:[%s0 + $0x200] sm:$0xff]
  %v76 = vld [vmem:[%s0 + $0x208] sm:$0xff]
  %v77 = vld [vmem:[%s0 + $0x210] sm:$0xff]
  %v78 = vld [vmem:[%s0 + $0x218] sm:$0xff]
  %v79 = vld [vmem:[%s0 + $0x220] sm:$0xff]
  %v80 = vld [vmem:[%s0 + $0x228] sm:$0xff]
  %v81 = vld [vmem:[%s0 + $0x230] sm:$0xff]
  %v82 = vld [vmem:[%s0 + $0x238] sm:$0xff]
  %v83 = vld [vmem:[%s0 + $0x240] sm:$0xff]
  %v84 = vld [vmem:[%s0 + $0x248] sm:$0xff]
  %v85 = vld [vmem:[%s0 + $0x250] sm:$0xff]
  %v86 = vld [vmem:[%s0 + $0x258] sm:$0xff]
  %v87 = vld [vmem:[%s0 + $0x260] sm:$0xff]
  %v88 = vld [vmem:[%s0 + $0x268] sm:$0xff]
  %v89 = vld [vmem:[%s0 + $0x270] sm:$0xff]
  %v90 = vld [vmem:[%s0 + $0x278] sm:$0xff]
  %v91 = vld [vmem:[%s0 + $0x280] sm:$0xff]
  %v92 = vld [vmem:[%s0 + $0x288] sm:$0xff]
  %v93 = vld [vmem:[%s0 + $0x290] sm:$0xff]
  %v94 = vld [vmem:[%s0 + $0x298] sm:$0xff]
  %v95 = vld [vmem:[%s0 + $0x2a0] sm:$0xff]
  %v96 = vld [vmem:[%s0 + $0x2a8] sm:$0xff]
  %v97 = vld [vmem:[%s0 + $0x2b0] sm:$0xff]
  %v98 = vld [vmem:[%s0 + $0x2b8] sm:$0xff]
  %v99 = vld [vmem:[%s0 + $0x2c0] sm:$0xff]
  %v100 = vld [vmem:[%s0 + $0x2c8] sm:$0xff]
  %v101 = vld [vmem:[%s0 + $0x2d0] sm:$0xff]
  %v102 = vld [vmem:[%s0 + $0x2d8] sm:$0xff]
  %v103 = vld [vmem:[%s0 + $0x2e0] sm:$0xff]
  %v104 = vld [vmem:[%s0 + $0x2e8] sm:$0xff]
  %v105 = vld [vmem:[%s0 + $0x2f0] sm:$0xff]
  %v106 = vld [vmem:[%s0 + $0x2f8] sm:$0xff]
  %v107 = vld [vmem:[%s0 + $0x300] sm:$0xff]
  %v108 = vld [vmem:[%s0 + $0x308] sm:$0xff]
  %v109 = vld [vmem:[%s0 + $0x310] sm:$0xff]
  %v110 = vld [vmem:[%s0 + $0x318] sm:$0xff]
  %v111 = vld [vmem:[%s0 + $0x320] sm:$0xff]
  %v112 = vld [vmem:[%s0 + $0x328] sm:$0xff]
  %v113 = vld [vmem:[%s0 + $0x330] sm:$0xff]
  %v114 = vld [vmem:[%s0 + $0x338] sm:$0xff]
  %v115 = vld [vmem:[%s0 + $0x340] sm:$0xff]
  %v116 = vld [vmem:[%s0 + $0x348] sm:$0xff]
  %v117 = vld [vmem:[%s0 + $0x350] sm:$0xff]
  %v118 = vld [vmem:[%s0 + $0x358] sm:$0xff]
  %v119 = vld [vmem:[%s0 + $0x360] sm:$0xff]
  %v120 = vld [vmem:[%s0 + $0x368] sm:$0xff]
  %v121 = vld [vmem:[%s0 + $0x370] sm:$0xff]
  %v122 = vld [vmem:[%s0 + $0x378] sm:$0xff]
  %v123 = vld [vmem:[%s0 + $0x380] sm:$0xff]
  %v124 = vld [vmem:[%s0 + $0x388] sm:$0xff]
  %v125 = vld [vmem:[%s0 + $0x390] sm:$0xff]
  %v126 = vld [vmem:[%s0 + $0x398] sm:$0xff]
  %v127 = vld [vmem:[%s0 + $0x3a0] sm:$0xff]
  %v128 = vld [vmem:[%s0 + $0x3a8] sm:$0xff]
  %v129 = vld [vmem:[%s0 + $0x3b0] sm:$0xff]
  %v130 = vld [vmem:[%s0 + $0x3b8] sm:$0xff]
  %v131 = vld [vmem:[%s0 + $0x3c0] sm:$0xff]
  %v132 = vld [vmem:[%s0 + $0x3c8] sm:$0xff]
  %v133 = vld [vmem:[%s0 + $0x3d0] sm:$0xff]
  %v134 = vld [vmem:[%s0 + $0x3d8] sm:$0xff]
  %v135 = vld [vmem:[%s0 + $0x3e0] sm:$0xff]
  %v136 = vld [vmem:[%s0 + $0x3e8] sm:$0xff]
  %v137 = vld [vmem:[%s0 + $0x3f0] sm:$0xff]
  %v138 = vld [vmem:[%s0 + $0x3f8] sm:$0xff]
  %v139 = vld [vmem:[%s1] sm:$0xff]
  %vm140 = vcmask 64512
  %v142 = vsel %vm140, %v11, 0
  %v145 = vsel %vm140, %v12, 0
  %v148 = vsel %vm140, %v13, 0
  %v151 = vsel %vm140, %v14, 0
  %v154 = vsel %vm140, %v15, 0
  %v157 = vsel %vm140, %v16, 0
  %v160 = vsel %vm140, %v17, 0
  %v163 = vsel %vm140, %v18, 0
  %v166 = vsel %vm140, %v19, 0
  %v169 = vsel %vm140, %v20, 0
  %v172 = vsel %vm140, %v21, 0
  %v175 = vsel %vm140, %v22, 0
  %v178 = vsel %vm140, %v23, 0
  %v181 = vsel %vm140, %v24, 0
  %v184 = vsel %vm140, %v25, 0
  %v187 = vsel %vm140, %v26, 0
  %v190 = vsel %vm140, %v27, 0
  %v193 = vsel %vm140, %v28, 0
  %v196 = vsel %vm140, %v29, 0
  %v199 = vsel %vm140, %v30, 0
  %v202 = vsel %vm140, %v31, 0
  %v205 = vsel %vm140, %v32, 0
  %v208 = vsel %vm140, %v33, 0
  %v211 = vsel %vm140, %v34, 0
  %v214 = vsel %vm140, %v35, 0
  %v217 = vsel %vm140, %v36, 0
  %v220 = vsel %vm140, %v37, 0
  %v223 = vsel %vm140, %v38, 0
  %v226 = vsel %vm140, %v39, 0
  %v229 = vsel %vm140, %v40, 0
  %v232 = vsel %vm140, %v41, 0
  %v235 = vsel %vm140, %v42, 0
  %v238 = vsel %vm140, %v43, 0
  %v241 = vsel %vm140, %v44, 0
  %v244 = vsel %vm140, %v45, 0
  %v247 = vsel %vm140, %v46, 0
  %v250 = vsel %vm140, %v47, 0
  %v253 = vsel %vm140, %v48, 0
  %v256 = vsel %vm140, %v49, 0
  %v259 = vsel %vm140, %v50, 0
  %v262 = vsel %vm140, %v51, 0
  %v265 = vsel %vm140, %v52, 0
  %v268 = vsel %vm140, %v53, 0
  %v271 = vsel %vm140, %v54, 0
  %v274 = vsel %vm140, %v55, 0
  %v277 = vsel %vm140, %v56, 0
  %v280 = vsel %vm140, %v57, 0
  %v283 = vsel %vm140, %v58, 0
  %v286 = vsel %vm140, %v59, 0
  %v289 = vsel %vm140, %v60, 0
  %v292 = vsel %vm140, %v61, 0
  %v295 = vsel %vm140, %v62, 0
  %v298 = vsel %vm140, %v63, 0
  %v301 = vsel %vm140, %v64, 0
  %v304 = vsel %vm140, %v65, 0
  %v307 = vsel %vm140, %v66, 0
  %v310 = vsel %vm140, %v67, 0
  %v313 = vsel %vm140, %v68, 0
  %v316 = vsel %vm140, %v69, 0
  %v319 = vsel %vm140, %v70, 0
  %v322 = vsel %vm140, %v71, 0
  %v325 = vsel %vm140, %v72, 0
  %v328 = vsel %vm140, %v73, 0
  %v331 = vsel %vm140, %v74, 0
  %v334 = vsel %vm140, %v75, 0
  %v337 = vsel %vm140, %v76, 0
  %v340 = vsel %vm140, %v77, 0
  %v343 = vsel %vm140, %v78, 0
  %v346 = vsel %vm140, %v79, 0
  %v349 = vsel %vm140, %v80, 0
  %v352 = vsel %vm140, %v81, 0
  %v355 = vsel %vm140, %v82, 0
  %v358 = vsel %vm140, %v83, 0
  %v361 = vsel %vm140, %v84, 0
  %v364 = vsel %vm140, %v85, 0
  %v367 = vsel %vm140, %v86, 0
  %v370 = vsel %vm140, %v87, 0
  %v373 = vsel %vm140, %v88, 0
  %v376 = vsel %vm140, %v89, 0
  %v379 = vsel %vm140, %v90, 0
  %v382 = vsel %vm140, %v91, 0
  %v385 = vsel %vm140, %v92, 0
  %v388 = vsel %vm140, %v93, 0
  %v391 = vsel %vm140, %v94, 0
  %v394 = vsel %vm140, %v95, 0
  %v397 = vsel %vm140, %v96, 0
  %v400 = vsel %vm140, %v97, 0
  %v403 = vsel %vm140, %v98, 0
  %v406 = vsel %vm140, %v99, 0
  %v409 = vsel %vm140, %v100, 0
  %v412 = vsel %vm140, %v101, 0
  %v415 = vsel %vm140, %v102, 0
  %v418 = vsel %vm140, %v103, 0
  %v421 = vsel %vm140, %v104, 0
  %v424 = vsel %vm140, %v105, 0
  %v427 = vsel %vm140, %v106, 0
  %v430 = vsel %vm140, %v107, 0
  %v433 = vsel %vm140, %v108, 0
  %v436 = vsel %vm140, %v109, 0
  %v439 = vsel %vm140, %v110, 0
  %v442 = vsel %vm140, %v111, 0
  %v445 = vsel %vm140, %v112, 0
  %v448 = vsel %vm140, %v113, 0
  %v451 = vsel %vm140, %v114, 0
  %v454 = vsel %vm140, %v115, 0
  %v457 = vsel %vm140, %v116, 0
  %v460 = vsel %vm140, %v117, 0
  %v463 = vsel %vm140, %v118, 0
  %v466 = vsel %vm140, %v119, 0
  %v469 = vsel %vm140, %v120, 0
  %v472 = vsel %vm140, %v121, 0
  %v475 = vsel %vm140, %v122, 0
  %v478 = vsel %vm140, %v123, 0
  %v481 = vsel %vm140, %v124, 0
  %v484 = vsel %vm140, %v125, 0
  %v487 = vsel %vm140, %v126, 0
  %v490 = vsel %vm140, %v127, 0
  %v493 = vsel %vm140, %v128, 0
  %v496 = vsel %vm140, %v129, 0
  %v499 = vsel %vm140, %v130, 0
  %v502 = vsel %vm140, %v131, 0
  %v505 = vsel %vm140, %v132, 0
  %v508 = vsel %vm140, %v133, 0
  %v511 = vsel %vm140, %v134, 0
  %v514 = vsel %vm140, %v135, 0
  %v517 = vsel %vm140, %v136, 0
  %v520 = vsel %vm140, %v137, 0
  %v523 = vsel %vm140, %v138, 0
  %525 = vmatprep.subr.mxu0 0.0
  %526 = vmatpush1.msra.mxu0 %v139
  %527 = vmatprep.subr.mxu0 0.0
  %528 = vmatpush1.msra.mxu0 0.0
  %529 = vmatprep.subr.mxu0 0.0
  %530 = vmatpush1.msra.mxu0 0.0
  %531 = vmatprep.subr.mxu0 0.0
  %532 = vmatpush1.msra.mxu0 0.0
  %533 = vmatprep.subr.mxu0 0.0
  %534 = vmatpush1.msra.mxu0 0.0
  %535 = vmatprep.subr.mxu0 0.0
  %536 = vmatpush1.msra.mxu0 0.0
  %537 = vmatprep.subr.mxu0 0.0
  %538 = vmatpush1.msra.mxu0 0.0
  %539 = vmatprep.subr.mxu0 0.0
  %540 = vmatpush1.msra.mxu0 0.0
  %541 = vmatprep.subr.mxu0 0.0
  %542 = vmatpush1.msra.mxu0 0.0
  %543 = vmatprep.subr.mxu0 0.0
  %544 = vmatpush1.msra.mxu0 0.0
  %545 = vmatprep.subr.mxu0 0.0
  %546 = vmatpush1.msra.mxu0 0.0
  %547 = vmatprep.subr.mxu0 0.0
  %548 = vmatpush1.msra.mxu0 0.0
  %549 = vmatprep.subr.mxu0 0.0
  %550 = vmatpush1.msra.mxu0 0.0
  %551 = vmatprep.subr.mxu0 0.0
  %552 = vmatpush1.msra.mxu0 0.0
  %553 = vmatprep.subr.mxu0 0.0
  %554 = vmatpush1.msra.mxu0 0.0
  %555 = vmatprep.subr.mxu0 0.0
  %556 = vmatpush1.msra.mxu0 0.0
  %557 = vmatprep.subr.mxu0 0.0
  %558 = vmatpush1.msra.mxu0 0.0
  %559 = vmatprep.subr.mxu0 0.0
  %560 = vmatpush1.msra.mxu0 0.0
  %561 = vmatprep.subr.mxu0 0.0
  %562 = vmatpush1.msra.mxu0 0.0
  %563 = vmatprep.subr.mxu0 0.0
  %564 = vmatpush1.msra.mxu0 0.0
  %565 = vmatprep.subr.mxu0 0.0
  %566 = vmatpush1.msra.mxu0 0.0
  %567 = vmatprep.subr.mxu0 0.0
  %568 = vmatpush1.msra.mxu0 0.0
  %569 = vmatprep.subr.mxu0 0.0
  %570 = vmatpush1.msra.mxu0 0.0
  %571 = vmatprep.subr.mxu0 0.0
  %572 = vmatpush1.msra.mxu0 0.0
  %573 = vmatprep.subr.mxu0 0.0
  %574 = vmatpush1.msra.mxu0 0.0
  %575 = vmatprep.subr.mxu0 0.0
  %576 = vmatpush1.msra.mxu0 0.0
  %577 = vmatprep.subr.mxu0 0.0
  %578 = vmatpush1.msra.mxu0 0.0
  %579 = vmatprep.subr.mxu0 0.0
  %580 = vmatpush1.msra.mxu0 0.0
  %581 = vmatprep.subr.mxu0 0.0
  %582 = vmatpush1.msra.mxu0 0.0
  %583 = vmatprep.subr.mxu0 0.0
  %584 = vmatpush1.msra.mxu0 0.0
  %585 = vmatprep.subr.mxu0 0.0
  %586 = vmatpush1.msra.mxu0 0.0
  %587 = vmatprep.subr.mxu0 0.0
  %588 = vmatpush1.msra.mxu0 0.0
  %589 = vmatprep.mubr.f32.mxu0 0.0
  %590 = vmatmul.mubr.f32.gmra.mrb[0].mxu0 %v142
  %v591 = vpop.f32.mrb[0].mxu0
  %v592 = vadd.f32 0.0, %v591
  %v593 = vpop.f32.mrb[0].mxu0
  %594 = vmatprep.mubr.f32.mxu0 0.0
  %595 = vmatmul.mubr.f32.gmra.mrb[0].mxu0 %v145
  %v596 = vpop.f32.mrb[0].mxu0
  %v597 = vadd.f32 0.0, %v596
  %v598 = vpop.f32.mrb[0].mxu0
  %599 = vmatprep.mubr.f32.mxu0 0.0
  %600 = vmatmul.mubr.f32.gmra.mrb[0].mxu0 %v148
  %v601 = vpop.f32.mrb[0].mxu0
  %v602 = vadd.f32 0.0, %v601
  %v603 = vpop.f32.mrb[0].mxu0
  %604 = vmatprep.mubr.f32.mxu0 0.0
  %605 = vmatmul.mubr.f32.gmra.mrb[0].mxu0 %v151
  %v606 = vpop.f32.mrb[0].mxu0
  %v607 = vadd.f32 0.0, %v606
  %v608 = vpop.f32.mrb[0].mxu0
  %609 = vmatprep.mubr.f32.mxu0 0.0
  %610 = vmatmul.mubr.f32.gmra.mrb[0].mxu0 %v154
  %v611 = vpop.f32.mrb[0].mxu0
  %v612 = vadd.f32 0.0, %v611
  %v613 = vpop.f32.mrb[0].mxu0
  %614 = vmatprep.mubr.f32.mxu0 0.0
  %615 = vmatmul.mubr.f32.gmra.mrb[0].mxu0 %v157
  %v616 = vpop.f32.mrb[0].mxu0
  %v617 = vadd.f32 0.0, %v616
  %v618 = vpop.f32.mrb[0].mxu0
  %619 = vmatprep.mubr.f32.mxu0 0.0
  %620 = vmatmul.mubr.f32.gmra.mrb[0].mxu0 %v160
  %v621 = vpop.f32.mrb[0].mxu0
  %v622 = vadd.f32 0.0, %v621
  %v623 = vpop.f32.mrb[0].mxu0
  %624 = vmatprep.mubr.f32.mxu0 0.0
  %625 = vmatmul.mubr.f32.gmra.mrb[0].mxu0 %v163
  %v626 = vpop.f32.mrb[0].mxu0
  %v627 = vadd.f32 0.0, %v626
  %v628 = vpop.f32.mrb[0].mxu0
  %629 = vmatprep.mubr.f32.mxu0 0.0
  %630 = vmatmul.mubr.f32.gmra.mrb[0].mxu0 %v166
  %v631 = vpop.f32.mrb[0].mxu0
  %v632 = vadd.f32 0.0, %v631
  %v633 = vpop.f32.mrb[0].mxu0
  %634 = vmatprep.mubr.f32.mxu0 0.0
  %635 = vmatmul.mubr.f32.gmra.mrb[0].mxu0 %v169
  %v636 = vpop.f32.mrb[0].mxu0
  %v637 = vadd.f32 0.0, %v636
  %v638 = vpop.f32.mrb[0].mxu0
  %639 = vmatprep.mubr.f32.mxu0 0.0
  %640 = vmatmul.mubr.f32.gmra.mrb[0].mxu0 %v172
  %v641 = vpop.f32.mrb[0].mxu0
  %v642 = vadd.f32 0.0, %v641
  %v643 = vpop.f32.mrb[0].mxu0
  %644 = vmatprep.mubr.f32.mxu0 0.0
  %645 = vmatmul.mubr.f32.gmra.mrb[0].mxu0 %v175
  %v646 = vpop.f32.mrb[0].mxu0
  %v647 = vadd.f32 0.0, %v646
  %v648 = vpop.f32.mrb[0].mxu0
  %649 = vmatprep.mubr.f32.mxu0 0.0
  %650 = vmatmul.mubr.f32.gmra.mrb[0].mxu0 %v178
  %v651 = vpop.f32.mrb[0].mxu0
  %v652 = vadd.f32 0.0, %v651
  %v653 = vpop.f32.mrb[0].mxu0
  %654 = vmatprep.mubr.f32.mxu0 0.0
  %655 = vmatmul.mubr.f32.gmra.mrb[0].mxu0 %v181
  %v656 = vpop.f32.mrb[0].mxu0
  %v657 = vadd.f32 0.0, %v656
  %v658 = vpop.f32.mrb[0].mxu0
  %659 = vmatprep.mubr.f32.mxu0 0.0
  %660 = vmatmul.mubr.f32.gmra.mrb[0].mxu0 %v184
  %v661 = vpop.f32.mrb[0].mxu0
  %v662 = vadd.f32 0.0, %v661
  %v663 = vpop.f32.mrb[0].mxu0
  %664 = vmatprep.mubr.f32.mxu0 0.0
  %665 = vmatmul.mubr.f32.gmra.mrb[0].mxu0 %v187
  %v666 = vpop.f32.mrb[0].mxu0
  %v667 = vadd.f32 0.0, %v666
  %v668 = vpop.f32.mrb[0].mxu0
  %669 = vmatprep.mubr.f32.mxu0 0.0
  %670 = vmatmul.mubr.f32.gmra.mrb[0].mxu0 %v190
  %v671 = vpop.f32.mrb[0].mxu0
  %v672 = vadd.f32 0.0, %v671
  %v673 = vpop.f32.mrb[0].mxu0
  %674 = vmatprep.mubr.f32.mxu0 0.0
  %675 = vmatmul.mubr.f32.gmra.mrb[0].mxu0 %v193
  %v676 = vpop.f32.mrb[0].mxu0
  %v677 = vadd.f32 0.0, %v676
  %v678 = vpop.f32.mrb[0].mxu0
  %679 = vmatprep.mubr.f32.mxu0 0.0
  %680 = vmatmul.mubr.f32.gmra.mrb[0].mxu0 %v196
  %v681 = vpop.f32.mrb[0].mxu0
  %v682 = vadd.f32 0.0, %v681
  %v683 = vpop.f32.mrb[0].mxu0
  %684 = vmatprep.mubr.f32.mxu0 0.0
  %685 = vmatmul.mubr.f32.gmra.mrb[0].mxu0 %v199
  %v686 = vpop.f32.mrb[0].mxu0
  %v687 = vadd.f32 0.0, %v686
  %v688 = vpop.f32.mrb[0].mxu0
  %689 = vmatprep.mubr.f32.mxu0 0.0
  %690 = vmatmul.mubr.f32.gmra.mrb[0].mxu0 %v202
  %v691 = vpop.f32.mrb[0].mxu0
  %v692 = vadd.f32 0.0, %v691
  %v693 = vpop.f32.mrb[0].mxu0
  %694 = vmatprep.mubr.f32.mxu0 0.0
  %695 = vmatmul.mubr.f32.gmra.mrb[0].mxu0 %v205
  %v696 = vpop.f32.mrb[0].mxu0
  %v697 = vadd.f32 0.0, %v696
  %v698 = vpop.f32.mrb[0].mxu0
  %699 = vmatprep.mubr.f32.mxu0 0.0
  %700 = vmatmul.mubr.f32.gmra.mrb[0].mxu0 %v208
  %v701 = vpop.f32.mrb[0].mxu0
  %v702 = vadd.f32 0.0, %v701
  %v703 = vpop.f32.mrb[0].mxu0
  %704 = vmatprep.mubr.f32.mxu0 0.0
  %705 = vmatmul.mubr.f32.gmra.mrb[0].mxu0 %v211
  %v706 = vpop.f32.mrb[0].mxu0
  %v707 = vadd.f32 0.0, %v706
  %v708 = vpop.f32.mrb[0].mxu0
  %709 = vmatprep.mubr.f32.mxu0 0.0
  %710 = vmatmul.mubr.f32.gmra.mrb[0].mxu0 %v214
  %v711 = vpop.f32.mrb[0].mxu0
  %v712 = vadd.f32 0.0, %v711
  %v713 = vpop.f32.mrb[0].mxu0
  %714 = vmatprep.mubr.f32.mxu0 0.0
  %715 = vmatmul.mubr.f32.gmra.mrb[0].mxu0 %v217
  %v716 = vpop.f32.mrb[0].mxu0
  %v717 = vadd.f32 0.0, %v716
  %v718 = vpop.f32.mrb[0].mxu0
  %719 = vmatprep.mubr.f32.mxu0 0.0
  %720 = vmatmul.mubr.f32.gmra.mrb[0].mxu0 %v220
  %v721 = vpop.f32.mrb[0].mxu0
  %v722 = vadd.f32 0.0, %v721
  %v723 = vpop.f32.mrb[0].mxu0
  %724 = vmatprep.mubr.f32.mxu0 0.0
  %725 = vmatmul.mubr.f32.gmra.mrb[0].mxu0 %v223
  %v726 = vpop.f32.mrb[0].mxu0
  %v727 = vadd.f32 0.0, %v726
  %v728 = vpop.f32.mrb[0].mxu0
  %729 = vmatprep.mubr.f32.mxu0 0.0
  %730 = vmatmul.mubr.f32.gmra.mrb[0].mxu0 %v226
  %v731 = vpop.f32.mrb[0].mxu0
  %v732 = vadd.f32 0.0, %v731
  %v733 = vpop.f32.mrb[0].mxu0
  %734 = vmatprep.mubr.f32.mxu0 0.0
  %735 = vmatmul.mubr.f32.gmra.mrb[0].mxu0 %v229
  %v736 = vpop.f32.mrb[0].mxu0
  %v737 = vadd.f32 0.0, %v736
  %v738 = vpop.f32.mrb[0].mxu0
  %739 = vmatprep.mubr.f32.mxu0 0.0
  %740 = vmatmul.mubr.f32.gmra.mrb[0].mxu0 %v232
  %v741 = vpop.f32.mrb[0].mxu0
  %v742 = vadd.f32 0.0, %v741
  %v743 = vpop.f32.mrb[0].mxu0
  %744 = vmatprep.mubr.f32.mxu0 0.0
  %745 = vmatmul.mubr.f32.gmra.mrb[0].mxu0 %v235
  %v746 = vpop.f32.mrb[0].mxu0
  %v747 = vadd.f32 0.0, %v746
  %v748 = vpop.f32.mrb[0].mxu0
  %749 = vmatprep.mubr.f32.mxu0 0.0
  %750 = vmatmul.mubr.f32.gmra.mrb[0].mxu0 %v238
  %v751 = vpop.f32.mrb[0].mxu0
  %v752 = vadd.f32 0.0, %v751
  %v753 = vpop.f32.mrb[0].mxu0
  %754 = vmatprep.mubr.f32.mxu0 0.0
  %755 = vmatmul.mubr.f32.gmra.mrb[0].mxu0 %v241
  %v756 = vpop.f32.mrb[0].mxu0
  %v757 = vadd.f32 0.0, %v756
  %v758 = vpop.f32.mrb[0].mxu0
  %759 = vmatprep.mubr.f32.mxu0 0.0
  %760 = vmatmul.mubr.f32.gmra.mrb[0].mxu0 %v244
  %v761 = vpop.f32.mrb[0].mxu0
  %v762 = vadd.f32 0.0, %v761
  %v763 = vpop.f32.mrb[0].mxu0
  %764 = vmatprep.mubr.f32.mxu0 0.0
  %765 = vmatmul.mubr.f32.gmra.mrb[0].mxu0 %v247
  %v766 = vpop.f32.mrb[0].mxu0
  %v767 = vadd.f32 0.0, %v766
  %v768 = vpop.f32.mrb[0].mxu0
  %769 = vmatprep.mubr.f32.mxu0 0.0
  %770 = vmatmul.mubr.f32.gmra.mrb[0].mxu0 %v250
  %v771 = vpop.f32.mrb[0].mxu0
  %v772 = vadd.f32 0.0, %v771
  %v773 = vpop.f32.mrb[0].mxu0
  %774 = vmatprep.mubr.f32.mxu0 0.0
  %775 = vmatmul.mubr.f32.gmra.mrb[0].mxu0 %v253
  %v776 = vpop.f32.mrb[0].mxu0
  %v777 = vadd.f32 0.0, %v776
  %v778 = vpop.f32.mrb[0].mxu0
  %779 = vmatprep.mubr.f32.mxu0 0.0
  %780 = vmatmul.mubr.f32.gmra.mrb[0].mxu0 %v256
  %v781 = vpop.f32.mrb[0].mxu0
  %v782 = vadd.f32 0.0, %v781
  %v783 = vpop.f32.mrb[0].mxu0
  %784 = vmatprep.mubr.f32.mxu0 0.0
  %785 = vmatmul.mubr.f32.gmra.mrb[0].mxu0 %v259
  %v786 = vpop.f32.mrb[0].mxu0
  %v787 = vadd.f32 0.0, %v786
  %v788 = vpop.f32.mrb[0].mxu0
  %789 = vmatprep.mubr.f32.mxu0 0.0
  %790 = vmatmul.mubr.f32.gmra.mrb[0].mxu0 %v262
  %v791 = vpop.f32.mrb[0].mxu0
  %v792 = vadd.f32 0.0, %v791
  %v793 = vpop.f32.mrb[0].mxu0
  %794 = vmatprep.mubr.f32.mxu0 0.0
  %795 = vmatmul.mubr.f32.gmra.mrb[0].mxu0 %v265
  %v796 = vpop.f32.mrb[0].mxu0
  %v797 = vadd.f32 0.0, %v796
  %v798 = vpop.f32.mrb[0].mxu0
  %799 = vmatprep.mubr.f32.mxu0 0.0
  %800 = vmatmul.mubr.f32.gmra.mrb[0].mxu0 %v268
  %v801 = vpop.f32.mrb[0].mxu0
  %v802 = vadd.f32 0.0, %v801
  %v803 = vpop.f32.mrb[0].mxu0
  %804 = vmatprep.mubr.f32.mxu0 0.0
  %805 = vmatmul.mubr.f32.gmra.mrb[0].mxu0 %v271
  %v806 = vpop.f32.mrb[0].mxu0
  %v807 = vadd.f32 0.0, %v806
  %v808 = vpop.f32.mrb[0].mxu0
  %809 = vmatprep.mubr.f32.mxu0 0.0
  %810 = vmatmul.mubr.f32.gmra.mrb[0].mxu0 %v274
  %v811 = vpop.f32.mrb[0].mxu0
  %v812 = vadd.f32 0.0, %v811
  %v813 = vpop.f32.mrb[0].mxu0
  %814 = vmatprep.mubr.f32.mxu0 0.0
  %815 = vmatmul.mubr.f32.gmra.mrb[0].mxu0 %v277
  %v816 = vpop.f32.mrb[0].mxu0
  %v817 = vadd.f32 0.0, %v816
  %v818 = vpop.f32.mrb[0].mxu0
  %819 = vmatprep.mubr.f32.mxu0 0.0
  %820 = vmatmul.mubr.f32.gmra.mrb[0].mxu0 %v280
  %v821 = vpop.f32.mrb[0].mxu0
  %v822 = vadd.f32 0.0, %v821
  %v823 = vpop.f32.mrb[0].mxu0
  %824 = vmatprep.mubr.f32.mxu0 0.0
  %825 = vmatmul.mubr.f32.gmra.mrb[0].mxu0 %v283
  %v826 = vpop.f32.mrb[0].mxu0
  %v827 = vadd.f32 0.0, %v826
  %v828 = vpop.f32.mrb[0].mxu0
  %829 = vmatprep.mubr.f32.mxu0 0.0
  %830 = vmatmul.mubr.f32.gmra.mrb[0].mxu0 %v286
  %v831 = vpop.f32.mrb[0].mxu0
  %v832 = vadd.f32 0.0, %v831
  %v833 = vpop.f32.mrb[0].mxu0
  %834 = vmatprep.mubr.f32.mxu0 0.0
  %835 = vmatmul.mubr.f32.gmra.mrb[0].mxu0 %v289
  %v836 = vpop.f32.mrb[0].mxu0
  %v837 = vadd.f32 0.0, %v836
  %v838 = vpop.f32.mrb[0].mxu0
  %839 = vmatprep.mubr.f32.mxu0 0.0
  %840 = vmatmul.mubr.f32.gmra.mrb[0].mxu0 %v292
  %v841 = vpop.f32.mrb[0].mxu0
  %v842 = vadd.f32 0.0, %v841
  %v843 = vpop.f32.mrb[0].mxu0
  %844 = vmatprep.mubr.f32.mxu0 0.0
  %845 = vmatmul.mubr.f32.gmra.mrb[0].mxu0 %v295
  %v846 = vpop.f32.mrb[0].mxu0
  %v847 = vadd.f32 0.0, %v846
  %v848 = vpop.f32.mrb[0].mxu0
  %849 = vmatprep.mubr.f32.mxu0 0.0
  %850 = vmatmul.mubr.f32.gmra.mrb[0].mxu0 %v298
  %v851 = vpop.f32.mrb[0].mxu0
  %v852 = vadd.f32 0.0, %v851
  %v853 = vpop.f32.mrb[0].mxu0
  %854 = vmatprep.mubr.f32.mxu0 0.0
  %855 = vmatmul.mubr.f32.gmra.mrb[0].mxu0 %v301
  %v856 = vpop.f32.mrb[0].mxu0
  %v857 = vadd.f32 0.0, %v856
  %v858 = vpop.f32.mrb[0].mxu0
  %859 = vmatprep.mubr.f32.mxu0 0.0
  %860 = vmatmul.mubr.f32.gmra.mrb[0].mxu0 %v304
  %v861 = vpop.f32.mrb[0].mxu0
  %v862 = vadd.f32 0.0, %v861
  %v863 = vpop.f32.mrb[0].mxu0
  %864 = vmatprep.mubr.f32.mxu0 0.0
  %865 = vmatmul.mubr.f32.gmra.mrb[0].mxu0 %v307
  %v866 = vpop.f32.mrb[0].mxu0
  %v867 = vadd.f32 0.0, %v866
  %v868 = vpop.f32.mrb[0].mxu0
  %869 = vmatprep.mubr.f32.mxu0 0.0
  %870 = vmatmul.mubr.f32.gmra.mrb[0].mxu0 %v310
  %v871 = vpop.f32.mrb[0].mxu0
  %v872 = vadd.f32 0.0, %v871
  %v873 = vpop.f32.mrb[0].mxu0
  %874 = vmatprep.mubr.f32.mxu0 0.0
  %875 = vmatmul.mubr.f32.gmra.mrb[0].mxu0 %v313
  %v876 = vpop.f32.mrb[0].mxu0
  %v877 = vadd.f32 0.0, %v876
  %v878 = vpop.f32.mrb[0].mxu0
  %879 = vmatprep.mubr.f32.mxu0 0.0
  %880 = vmatmul.mubr.f32.gmra.mrb[0].mxu0 %v316
  %v881 = vpop.f32.mrb[0].mxu0
  %v882 = vadd.f32 0.0, %v881
  %v883 = vpop.f32.mrb[0].mxu0
  %884 = vmatprep.mubr.f32.mxu0 0.0
  %885 = vmatmul.mubr.f32.gmra.mrb[0].mxu0 %v319
  %v886 = vpop.f32.mrb[0].mxu0
  %v887 = vadd.f32 0.0, %v886
  %v888 = vpop.f32.mrb[0].mxu0
  %889 = vmatprep.mubr.f32.mxu0 0.0
  %890 = vmatmul.mubr.f32.gmra.mrb[0].mxu0 %v322
  %v891 = vpop.f32.mrb[0].mxu0
  %v892 = vadd.f32 0.0, %v891
  %v893 = vpop.f32.mrb[0].mxu0
  %894 = vmatprep.mubr.f32.mxu0 0.0
  %895 = vmatmul.mubr.f32.gmra.mrb[0].mxu0 %v325
  %v896 = vpop.f32.mrb[0].mxu0
  %v897 = vadd.f32 0.0, %v896
  %v898 = vpop.f32.mrb[0].mxu0
  %899 = vmatprep.mubr.f32.mxu0 0.0
  %900 = vmatmul.mubr.f32.gmra.mrb[0].mxu0 %v328
  %v901 = vpop.f32.mrb[0].mxu0
  %v902 = vadd.f32 0.0, %v901
  %v903 = vpop.f32.mrb[0].mxu0
  %904 = vmatprep.mubr.f32.mxu0 0.0
  %905 = vmatmul.mubr.f32.gmra.mrb[0].mxu0 %v331
  %v906 = vpop.f32.mrb[0].mxu0
  %v907 = vadd.f32 0.0, %v906
  %v908 = vpop.f32.mrb[0].mxu0
  %909 = vmatprep.mubr.f32.mxu0 0.0
  %910 = vmatmul.mubr.f32.gmra.mrb[0].mxu0 %v334
  %v911 = vpop.f32.mrb[0].mxu0
  %v912 = vadd.f32 0.0, %v911
  %v913 = vpop.f32.mrb[0].mxu0
  %914 = vmatprep.mubr.f32.mxu0 0.0
  %915 = vmatmul.mubr.f32.gmra.mrb[0].mxu0 %v337
  %v916 = vpop.f32.mrb[0].mxu0
  %v917 = vadd.f32 0.0, %v916
  %v918 = vpop.f32.mrb[0].mxu0
  %919 = vmatprep.mubr.f32.mxu0 0.0
  %920 = vmatmul.mubr.f32.gmra.mrb[0].mxu0 %v340
  %v921 = vpop.f32.mrb[0].mxu0
  %v922 = vadd.f32 0.0, %v921
  %v923 = vpop.f32.mrb[0].mxu0
  %924 = vmatprep.mubr.f32.mxu0 0.0
  %925 = vmatmul.mubr.f32.gmra.mrb[0].mxu0 %v343
  %v926 = vpop.f32.mrb[0].mxu0
  %v927 = vadd.f32 0.0, %v926
  %v928 = vpop.f32.mrb[0].mxu0
  %929 = vmatprep.mubr.f32.mxu0 0.0
  %930 = vmatmul.mubr.f32.gmra.mrb[0].mxu0 %v346
  %v931 = vpop.f32.mrb[0].mxu0
  %v932 = vadd.f32 0.0, %v931
  %v933 = vpop.f32.mrb[0].mxu0
  %934 = vmatprep.mubr.f32.mxu0 0.0
  %935 = vmatmul.mubr.f32.gmra.mrb[0].mxu0 %v349
  %v936 = vpop.f32.mrb[0].mxu0
  %v937 = vadd.f32 0.0, %v936
  %v938 = vpop.f32.mrb[0].mxu0
  %939 = vmatprep.mubr.f32.mxu0 0.0
  %940 = vmatmul.mubr.f32.gmra.mrb[0].mxu0 %v352
  %v941 = vpop.f32.mrb[0].mxu0
  %v942 = vadd.f32 0.0, %v941
  %v943 = vpop.f32.mrb[0].mxu0
  %944 = vmatprep.mubr.f32.mxu0 0.0
  %945 = vmatmul.mubr.f32.gmra.mrb[0].mxu0 %v355
  %v946 = vpop.f32.mrb[0].mxu0
  %v947 = vadd.f32 0.0, %v946
  %v948 = vpop.f32.mrb[0].mxu0
  %949 = vmatprep.mubr.f32.mxu0 0.0
  %950 = vmatmul.mubr.f32.gmra.mrb[0].mxu0 %v358
  %v951 = vpop.f32.mrb[0].mxu0
  %v952 = vadd.f32 0.0, %v951
  %v953 = vpop.f32.mrb[0].mxu0
  %954 = vmatprep.mubr.f32.mxu0 0.0
  %955 = vmatmul.mubr.f32.gmra.mrb[0].mxu0 %v361
  %v956 = vpop.f32.mrb[0].mxu0
  %v957 = vadd.f32 0.0, %v956
  %v958 = vpop.f32.mrb[0].mxu0
  %959 = vmatprep.mubr.f32.mxu0 0.0
  %960 = vmatmul.mubr.f32.gmra.mrb[0].mxu0 %v364
  %v961 = vpop.f32.mrb[0].mxu0
  %v962 = vadd.f32 0.0, %v961
  %v963 = vpop.f32.mrb[0].mxu0
  %964 = vmatprep.mubr.f32.mxu0 0.0
  %965 = vmatmul.mubr.f32.gmra.mrb[0].mxu0 %v367
  %v966 = vpop.f32.mrb[0].mxu0
  %v967 = vadd.f32 0.0, %v966
  %v968 = vpop.f32.mrb[0].mxu0
  %969 = vmatprep.mubr.f32.mxu0 0.0
  %970 = vmatmul.mubr.f32.gmra.mrb[0].mxu0 %v370
  %v971 = vpop.f32.mrb[0].mxu0
  %v972 = vadd.f32 0.0, %v971
  %v973 = vpop.f32.mrb[0].mxu0
  %974 = vmatprep.mubr.f32.mxu0 0.0
  %975 = vmatmul.mubr.f32.gmra.mrb[0].mxu0 %v373
  %v976 = vpop.f32.mrb[0].mxu0
  %v977 = vadd.f32 0.0, %v976
  %v978 = vpop.f32.mrb[0].mxu0
  %979 = vmatprep.mubr.f32.mxu0 0.0
  %980 = vmatmul.mubr.f32.gmra.mrb[0].mxu0 %v376
  %v981 = vpop.f32.mrb[0].mxu0
  %v982 = vadd.f32 0.0, %v981
  %v983 = vpop.f32.mrb[0].mxu0
  %984 = vmatprep.mubr.f32.mxu0 0.0
  %985 = vmatmul.mubr.f32.gmra.mrb[0].mxu0 %v379
  %v986 = vpop.f32.mrb[0].mxu0
  %v987 = vadd.f32 0.0, %v986
  %v988 = vpop.f32.mrb[0].mxu0
  %989 = vmatprep.mubr.f32.mxu0 0.0
  %990 = vmatmul.mubr.f32.gmra.mrb[0].mxu0 %v382
  %v991 = vpop.f32.mrb[0].mxu0
  %v992 = vadd.f32 0.0, %v991
  %v993 = vpop.f32.mrb[0].mxu0
  %994 = vmatprep.mubr.f32.mxu0 0.0
  %995 = vmatmul.mubr.f32.gmra.mrb[0].mxu0 %v385
  %v996 = vpop.f32.mrb[0].mxu0
  %v997 = vadd.f32 0.0, %v996
  %v998 = vpop.f32.mrb[0].mxu0
  %999 = vmatprep.mubr.f32.mxu0 0.0
  %1000 = vmatmul.mubr.f32.gmra.mrb[0].mxu0 %v388
  %v1001 = vpop.f32.mrb[0].mxu0
  %v1002 = vadd.f32 0.0, %v1001
  %v1003 = vpop.f32.mrb[0].mxu0
  %1004 = vmatprep.mubr.f32.mxu0 0.0
  %1005 = vmatmul.mubr.f32.gmra.mrb[0].mxu0 %v391
  %v1006 = vpop.f32.mrb[0].mxu0
  %v1007 = vadd.f32 0.0, %v1006
  %v1008 = vpop.f32.mrb[0].mxu0
  %1009 = vmatprep.mubr.f32.mxu0 0.0
  %1010 = vmatmul.mubr.f32.gmra.mrb[0].mxu0 %v394
  %v1011 = vpop.f32.mrb[0].mxu0
  %v1012 = vadd.f32 0.0, %v1011
  %v1013 = vpop.f32.mrb[0].mxu0
  %1014 = vmatprep.mubr.f32.mxu0 0.0
  %1015 = vmatmul.mubr.f32.gmra.mrb[0].mxu0 %v397
  %v1016 = vpop.f32.mrb[0].mxu0
  %v1017 = vadd.f32 0.0, %v1016
  %v1018 = vpop.f32.mrb[0].mxu0
  %1019 = vmatprep.mubr.f32.mxu0 0.0
  %1020 = vmatmul.mubr.f32.gmra.mrb[0].mxu0 %v400
  %v1021 = vpop.f32.mrb[0].mxu0
  %v1022 = vadd.f32 0.0, %v1021
  %v1023 = vpop.f32.mrb[0].mxu0
  %1024 = vmatprep.mubr.f32.mxu0 0.0
  %1025 = vmatmul.mubr.f32.gmra.mrb[0].mxu0 %v403
  %v1026 = vpop.f32.mrb[0].mxu0
  %v1027 = vadd.f32 0.0, %v1026
  %v1028 = vpop.f32.mrb[0].mxu0
  %1029 = vmatprep.mubr.f32.mxu0 0.0
  %1030 = vmatmul.mubr.f32.gmra.mrb[0].mxu0 %v406
  %v1031 = vpop.f32.mrb[0].mxu0
  %v1032 = vadd.f32 0.0, %v1031
  %v1033 = vpop.f32.mrb[0].mxu0
  %1034 = vmatprep.mubr.f32.mxu0 0.0
  %1035 = vmatmul.mubr.f32.gmra.mrb[0].mxu0 %v409
  %v1036 = vpop.f32.mrb[0].mxu0
  %v1037 = vadd.f32 0.0, %v1036
  %v1038 = vpop.f32.mrb[0].mxu0
  %1039 = vmatprep.mubr.f32.mxu0 0.0
  %1040 = vmatmul.mubr.f32.gmra.mrb[0].mxu0 %v412
  %v1041 = vpop.f32.mrb[0].mxu0
  %v1042 = vadd.f32 0.0, %v1041
  %v1043 = vpop.f32.mrb[0].mxu0
  %1044 = vmatprep.mubr.f32.mxu0 0.0
  %1045 = vmatmul.mubr.f32.gmra.mrb[0].mxu0 %v415
  %v1046 = vpop.f32.mrb[0].mxu0
  %v1047 = vadd.f32 0.0, %v1046
  %v1048 = vpop.f32.mrb[0].mxu0
  %1049 = vmatprep.mubr.f32.mxu0 0.0
  %1050 = vmatmul.mubr.f32.gmra.mrb[0].mxu0 %v418
  %v1051 = vpop.f32.mrb[0].mxu0
  %v1052 = vadd.f32 0.0, %v1051
  %v1053 = vpop.f32.mrb[0].mxu0
  %1054 = vmatprep.mubr.f32.mxu0 0.0
  %1055 = vmatmul.mubr.f32.gmra.mrb[0].mxu0 %v421
  %v1056 = vpop.f32.mrb[0].mxu0
  %v1057 = vadd.f32 0.0, %v1056
  %v1058 = vpop.f32.mrb[0].mxu0
  %1059 = vmatprep.mubr.f32.mxu0 0.0
  %1060 = vmatmul.mubr.f32.gmra.mrb[0].mxu0 %v424
  %v1061 = vpop.f32.mrb[0].mxu0
  %v1062 = vadd.f32 0.0, %v1061
  %v1063 = vpop.f32.mrb[0].mxu0
  %1064 = vmatprep.mubr.f32.mxu0 0.0
  %1065 = vmatmul.mubr.f32.gmra.mrb[0].mxu0 %v427
  %v1066 = vpop.f32.mrb[0].mxu0
  %v1067 = vadd.f32 0.0, %v1066
  %v1068 = vpop.f32.mrb[0].mxu0
  %1069 = vmatprep.mubr.f32.mxu0 0.0
  %1070 = vmatmul.mubr.f32.gmra.mrb[0].mxu0 %v430
  %v1071 = vpop.f32.mrb[0].mxu0
  %v1072 = vadd.f32 0.0, %v1071
  %v1073 = vpop.f32.mrb[0].mxu0
  %1074 = vmatprep.mubr.f32.mxu0 0.0
  %1075 = vmatmul.mubr.f32.gmra.mrb[0].mxu0 %v433
  %v1076 = vpop.f32.mrb[0].mxu0
  %v1077 = vadd.f32 0.0, %v1076
  %v1078 = vpop.f32.mrb[0].mxu0
  %1079 = vmatprep.mubr.f32.mxu0 0.0
  %1080 = vmatmul.mubr.f32.gmra.mrb[0].mxu0 %v436
  %v1081 = vpop.f32.mrb[0].mxu0
  %v1082 = vadd.f32 0.0, %v1081
  %v1083 = vpop.f32.mrb[0].mxu0
  %1084 = vmatprep.mubr.f32.mxu0 0.0
  %1085 = vmatmul.mubr.f32.gmra.mrb[0].mxu0 %v439
  %v1086 = vpop.f32.mrb[0].mxu0
  %v1087 = vadd.f32 0.0, %v1086
  %v1088 = vpop.f32.mrb[0].mxu0
  %1089 = vmatprep.mubr.f32.mxu0 0.0
  %1090 = vmatmul.mubr.f32.gmra.mrb[0].mxu0 %v442
  %v1091 = vpop.f32.mrb[0].mxu0
  %v1092 = vadd.f32 0.0, %v1091
  %v1093 = vpop.f32.mrb[0].mxu0
  %1094 = vmatprep.mubr.f32.mxu0 0.0
  %1095 = vmatmul.mubr.f32.gmra.mrb[0].mxu0 %v445
  %v1096 = vpop.f32.mrb[0].mxu0
  %v1097 = vadd.f32 0.0, %v1096
  %v1098 = vpop.f32.mrb[0].mxu0
  %1099 = vmatprep.mubr.f32.mxu0 0.0
  %1100 = vmatmul.mubr.f32.gmra.mrb[0].mxu0 %v448
  %v1101 = vpop.f32.mrb[0].mxu0
  %v1102 = vadd.f32 0.0, %v1101
  %v1103 = vpop.f32.mrb[0].mxu0
  %1104 = vmatprep.mubr.f32.mxu0 0.0
  %1105 = vmatmul.mubr.f32.gmra.mrb[0].mxu0 %v451
  %v1106 = vpop.f32.mrb[0].mxu0
  %v1107 = vadd.f32 0.0, %v1106
  %v1108 = vpop.f32.mrb[0].mxu0
  %1109 = vmatprep.mubr.f32.mxu0 0.0
  %1110 = vmatmul.mubr.f32.gmra.mrb[0].mxu0 %v454
  %v1111 = vpop.f32.mrb[0].mxu0
  %v1112 = vadd.f32 0.0, %v1111
  %v1113 = vpop.f32.mrb[0].mxu0
  %1114 = vmatprep.mubr.f32.mxu0 0.0
  %1115 = vmatmul.mubr.f32.gmra.mrb[0].mxu0 %v457
  %v1116 = vpop.f32.mrb[0].mxu0
  %v1117 = vadd.f32 0.0, %v1116
  %v1118 = vpop.f32.mrb[0].mxu0
  %1119 = vmatprep.mubr.f32.mxu0 0.0
  %1120 = vmatmul.mubr.f32.gmra.mrb[0].mxu0 %v460
  %v1121 = vpop.f32.mrb[0].mxu0
  %v1122 = vadd.f32 0.0, %v1121
  %v1123 = vpop.f32.mrb[0].mxu0
  %1124 = vmatprep.mubr.f32.mxu0 0.0
  %1125 = vmatmul.mubr.f32.gmra.mrb[0].mxu0 %v463
  %v1126 = vpop.f32.mrb[0].mxu0
  %v1127 = vadd.f32 0.0, %v1126
  %v1128 = vpop.f32.mrb[0].mxu0
  %1129 = vmatprep.mubr.f32.mxu0 0.0
  %1130 = vmatmul.mubr.f32.gmra.mrb[0].mxu0 %v466
  %v1131 = vpop.f32.mrb[0].mxu0
  %v1132 = vadd.f32 0.0, %v1131
  %v1133 = vpop.f32.mrb[0].mxu0
  %1134 = vmatprep.mubr.f32.mxu0 0.0
  %1135 = vmatmul.mubr.f32.gmra.mrb[0].mxu0 %v469
  %v1136 = vpop.f32.mrb[0].mxu0
  %v1137 = vadd.f32 0.0, %v1136
  %v1138 = vpop.f32.mrb[0].mxu0
  %1139 = vmatprep.mubr.f32.mxu0 0.0
  %1140 = vmatmul.mubr.f32.gmra.mrb[0].mxu0 %v472
  %v1141 = vpop.f32.mrb[0].mxu0
  %v1142 = vadd.f32 0.0, %v1141
  %v1143 = vpop.f32.mrb[0].mxu0
  %1144 = vmatprep.mubr.f32.mxu0 0.0
  %1145 = vmatmul.mubr.f32.gmra.mrb[0].mxu0 %v475
  %v1146 = vpop.f32.mrb[0].mxu0
  %v1147 = vadd.f32 0.0, %v1146
  %v1148 = vpop.f32.mrb[0].mxu0
  %1149 = vmatprep.mubr.f32.mxu0 0.0
  %1150 = vmatmul.mubr.f32.gmra.mrb[0].mxu0 %v478
  %v1151 = vpop.f32.mrb[0].mxu0
  %v1152 = vadd.f32 0.0, %v1151
  %v1153 = vpop.f32.mrb[0].mxu0
  %1154 = vmatprep.mubr.f32.mxu0 0.0
  %1155 = vmatmul.mubr.f32.gmra.mrb[0].mxu0 %v481
  %v1156 = vpop.f32.mrb[0].mxu0
  %v1157 = vadd.f32 0.0, %v1156
  %v1158 = vpop.f32.mrb[0].mxu0
  %1159 = vmatprep.mubr.f32.mxu0 0.0
  %1160 = vmatmul.mubr.f32.gmra.mrb[0].mxu0 %v484
  %v1161 = vpop.f32.mrb[0].mxu0
  %v1162 = vadd.f32 0.0, %v1161
  %v1163 = vpop.f32.mrb[0].mxu0
  %1164 = vmatprep.mubr.f32.mxu0 0.0
  %1165 = vmatmul.mubr.f32.gmra.mrb[0].mxu0 %v487
  %v1166 = vpop.f32.mrb[0].mxu0
  %v1167 = vadd.f32 0.0, %v1166
  %v1168 = vpop.f32.mrb[0].mxu0
  %1169 = vmatprep.mubr.f32.mxu0 0.0
  %1170 = vmatmul.mubr.f32.gmra.mrb[0].mxu0 %v490
  %v1171 = vpop.f32.mrb[0].mxu0
  %v1172 = vadd.f32 0.0, %v1171
  %v1173 = vpop.f32.mrb[0].mxu0
  %1174 = vmatprep.mubr.f32.mxu0 0.0
  %1175 = vmatmul.mubr.f32.gmra.mrb[0].mxu0 %v493
  %v1176 = vpop.f32.mrb[0].mxu0
  %v1177 = vadd.f32 0.0, %v1176
  %v1178 = vpop.f32.mrb[0].mxu0
  %1179 = vmatprep.mubr.f32.mxu0 0.0
  %1180 = vmatmul.mubr.f32.gmra.mrb[0].mxu0 %v496
  %v1181 = vpop.f32.mrb[0].mxu0
  %v1182 = vadd.f32 0.0, %v1181
  %v1183 = vpop.f32.mrb[0].mxu0
  %1184 = vmatprep.mubr.f32.mxu0 0.0
  %1185 = vmatmul.mubr.f32.gmra.mrb[0].mxu0 %v499
  %v1186 = vpop.f32.mrb[0].mxu0
  %v1187 = vadd.f32 0.0, %v1186
  %v1188 = vpop.f32.mrb[0].mxu0
  %1189 = vmatprep.mubr.f32.mxu0 0.0
  %1190 = vmatmul.mubr.f32.gmra.mrb[0].mxu0 %v502
  %v1191 = vpop.f32.mrb[0].mxu0
  %v1192 = vadd.f32 0.0, %v1191
  %v1193 = vpop.f32.mrb[0].mxu0
  %1194 = vmatprep.mubr.f32.mxu0 0.0
  %1195 = vmatmul.mubr.f32.gmra.mrb[0].mxu0 %v505
  %v1196 = vpop.f32.mrb[0].mxu0
  %v1197 = vadd.f32 0.0, %v1196
  %v1198 = vpop.f32.mrb[0].mxu0
  %1199 = vmatprep.mubr.f32.mxu0 0.0
  %1200 = vmatmul.mubr.f32.gmra.mrb[0].mxu0 %v508
  %v1201 = vpop.f32.mrb[0].mxu0
  %v1202 = vadd.f32 0.0, %v1201
  %v1203 = vpop.f32.mrb[0].mxu0
  %1204 = vmatprep.mubr.f32.mxu0 0.0
  %1205 = vmatmul.mubr.f32.gmra.mrb[0].mxu0 %v511
  %v1206 = vpop.f32.mrb[0].mxu0
  %v1207 = vadd.f32 0.0, %v1206
  %v1208 = vpop.f32.mrb[0].mxu0
  %1209 = vmatprep.mubr.f32.mxu0 0.0
  %1210 = vmatmul.mubr.f32.gmra.mrb[0].mxu0 %v514
  %v1211 = vpop.f32.mrb[0].mxu0
  %v1212 = vadd.f32 0.0, %v1211
  %v1213 = vpop.f32.mrb[0].mxu0
  %1214 = vmatprep.mubr.f32.mxu0 0.0
  %1215 = vmatmul.mubr.f32.gmra.mrb[0].mxu0 %v517
  %v1216 = vpop.f32.mrb[0].mxu0
  %v1217 = vadd.f32 0.0, %v1216
  %v1218 = vpop.f32.mrb[0].mxu0
  %1219 = vmatprep.mubr.f32.mxu0 0.0
  %1220 = vmatmul.mubr.f32.gmra.mrb[0].mxu0 %v520
  %v1221 = vpop.f32.mrb[0].mxu0
  %v1222 = vadd.f32 0.0, %v1221
  %v1223 = vpop.f32.mrb[0].mxu0
  %1224 = vmatprep.mubr.f32.mxu0 0.0
  %1225 = vmatmul.mubr.f32.gmra.mrb[0].mxu0 %v523
  %v1226 = vpop.f32.mrb[0].mxu0
  %v1227 = vadd.f32 0.0, %v1226
  %v1228 = vpop.f32.mrb[0].mxu0
  %1229 = vdwg.mxu0
  %vm1230 = vcmask 130048
  %1231 = vst.msk [vmem:[%s2] sm:$0xff] %vm1230, %v592
  %1232 = vst.msk [vmem:[%s2 + $0x8] sm:$0xff] %vm1230, %v597
  %1233 = vst.msk [vmem:[%s2 + $0x10] sm:$0xff] %vm1230, %v602
  %1234 = vst.msk [vmem:[%s2 + $0x18] sm:$0xff] %vm1230, %v607
  %1235 = vst.msk [vmem:[%s2 + $0x20] sm:$0xff] %vm1230, %v612
  %1236 = vst.msk [vmem:[%s2 + $0x28] sm:$0xff] %vm1230, %v617
  %1237 = vst.msk [vmem:[%s2 + $0x30] sm:$0xff] %vm1230, %v622
  %1238 = vst.msk [vmem:[%s2 + $0x38] sm:$0xff] %vm1230, %v627
  %1239 = vst.msk [vmem:[%s2 + $0x40] sm:$0xff] %vm1230, %v632
  %1240 = vst.msk [vmem:[%s2 + $0x48] sm:$0xff] %vm1230, %v637
  %1241 = vst.msk [vmem:[%s2 + $0x50] sm:$0xff] %vm1230, %v642
  %1242 = vst.msk [vmem:[%s2 + $0x58] sm:$0xff] %vm1230, %v647
  %1243 = vst.msk [vmem:[%s2 + $0x60] sm:$0xff] %vm1230, %v652
  %1244 = vst.msk [vmem:[%s2 + $0x68] sm:$0xff] %vm1230, %v657
  %1245 = vst.msk [vmem:[%s2 + $0x70] sm:$0xff] %vm1230, %v662
  %1246 = vst.msk [vmem:[%s2 + $0x78] sm:$0xff] %vm1230, %v667
  %1247 = vst.msk [vmem:[%s2 + $0x80] sm:$0xff] %vm1230, %v672
  %1248 = vst.msk [vmem:[%s2 + $0x88] sm:$0xff] %vm1230, %v677
  %1249 = vst.msk [vmem:[%s2 + $0x90] sm:$0xff] %vm1230, %v682
  %1250 = vst.msk [vmem:[%s2 + $0x98] sm:$0xff] %vm1230, %v687
  %1251 = vst.msk [vmem:[%s2 + $0xa0] sm:$0xff] %vm1230, %v692
  %1252 = vst.msk [vmem:[%s2 + $0xa8] sm:$0xff] %vm1230, %v697
  %1253 = vst.msk [vmem:[%s2 + $0xb0] sm:$0xff] %vm1230, %v702
  %1254 = vst.msk [vmem:[%s2 + $0xb8] sm:$0xff] %vm1230, %v707
  %1255 = vst.msk [vmem:[%s2 + $0xc0] sm:$0xff] %vm1230, %v712
  %1256 = vst.msk [vmem:[%s2 + $0xc8] sm:$0xff] %vm1230, %v717
  %1257 = vst.msk [vmem:[%s2 + $0xd0] sm:$0xff] %vm1230, %v722
  %1258 = vst.msk [vmem:[%s2 + $0xd8] sm:$0xff] %vm1230, %v727
  %1259 = vst.msk [vmem:[%s2 + $0xe0] sm:$0xff] %vm1230, %v732
  %1260 = vst.msk [vmem:[%s2 + $0xe8] sm:$0xff] %vm1230, %v737
  %1261 = vst.msk [vmem:[%s2 + $0xf0] sm:$0xff] %vm1230, %v742
  %1262 = vst.msk [vmem:[%s2 + $0xf8] sm:$0xff] %vm1230, %v747
  %1263 = vst.msk [vmem:[%s2 + $0x100] sm:$0xff] %vm1230, %v752
  %1264 = vst.msk [vmem:[%s2 + $0x108] sm:$0xff] %vm1230, %v757
  %1265 = vst.msk [vmem:[%s2 + $0x110] sm:$0xff] %vm1230, %v762
  %1266 = vst.msk [vmem:[%s2 + $0x118] sm:$0xff] %vm1230, %v767
  %1267 = vst.msk [vmem:[%s2 + $0x120] sm:$0xff] %vm1230, %v772
  %1268 = vst.msk [vmem:[%s2 + $0x128] sm:$0xff] %vm1230, %v777
  %1269 = vst.msk [vmem:[%s2 + $0x130] sm:$0xff] %vm1230, %v782
  %1270 = vst.msk [vmem:[%s2 + $0x138] sm:$0xff] %vm1230, %v787
  %1271 = vst.msk [vmem:[%s2 + $0x140] sm:$0xff] %vm1230, %v792
  %1272 = vst.msk [vmem:[%s2 + $0x148] sm:$0xff] %vm1230, %v797
  %1273 = vst.msk [vmem:[%s2 + $0x150] sm:$0xff] %vm1230, %v802
  %1274 = vst.msk [vmem:[%s2 + $0x158] sm:$0xff] %vm1230, %v807
  %1275 = vst.msk [vmem:[%s2 + $0x160] sm:$0xff] %vm1230, %v812
  %1276 = vst.msk [vmem:[%s2 + $0x168] sm:$0xff] %vm1230, %v817
  %1277 = vst.msk [vmem:[%s2 + $0x170] sm:$0xff] %vm1230, %v822
  %1278 = vst.msk [vmem:[%s2 + $0x178] sm:$0xff] %vm1230, %v827
  %1279 = vst.msk [vmem:[%s2 + $0x180] sm:$0xff] %vm1230, %v832
  %1280 = vst.msk [vmem:[%s2 + $0x188] sm:$0xff] %vm1230, %v837
  %1281 = vst.msk [vmem:[%s2 + $0x190] sm:$0xff] %vm1230, %v842
  %1282 = vst.msk [vmem:[%s2 + $0x198] sm:$0xff] %vm1230, %v847
  %1283 = vst.msk [vmem:[%s2 + $0x1a0] sm:$0xff] %vm1230, %v852
  %1284 = vst.msk [vmem:[%s2 + $0x1a8] sm:$0xff] %vm1230, %v857
  %1285 = vst.msk [vmem:[%s2 + $0x1b0] sm:$0xff] %vm1230, %v862
  %1286 = vst.msk [vmem:[%s2 + $0x1b8] sm:$0xff] %vm1230, %v867
  %1287 = vst.msk [vmem:[%s2 + $0x1c0] sm:$0xff] %vm1230, %v872
  %1288 = vst.msk [vmem:[%s2 + $0x1c8] sm:$0xff] %vm1230, %v877
  %1289 = vst.msk [vmem:[%s2 + $0x1d0] sm:$0xff] %vm1230, %v882
  %1290 = vst.msk [vmem:[%s2 + $0x1d8] sm:$0xff] %vm1230, %v887
  %1291 = vst.msk [vmem:[%s2 + $0x1e0] sm:$0xff] %vm1230, %v892
  %1292 = vst.msk [vmem:[%s2 + $0x1e8] sm:$0xff] %vm1230, %v897
  %1293 = vst.msk [vmem:[%s2 + $0x1f0] sm:$0xff] %vm1230, %v902
  %1294 = vst.msk [vmem:[%s2 + $0x1f8] sm:$0xff] %vm1230, %v907
  %1295 = vst.msk [vmem:[%s2 + $0x200] sm:$0xff] %vm1230, %v912
  %1296 = vst.msk [vmem:[%s2 + $0x208] sm:$0xff] %vm1230, %v917
  %1297 = vst.msk [vmem:[%s2 + $0x210] sm:$0xff] %vm1230, %v922
  %1298 = vst.msk [vmem:[%s2 + $0x218] sm:$0xff] %vm1230, %v927
  %1299 = vst.msk [vmem:[%s2 + $0x220] sm:$0xff] %vm1230, %v932
  %1300 = vst.msk [vmem:[%s2 + $0x228] sm:$0xff] %vm1230, %v937
  %1301 = vst.msk [vmem:[%s2 + $0x230] sm:$0xff] %vm1230, %v942
  %1302 = vst.msk [vmem:[%s2 + $0x238] sm:$0xff] %vm1230, %v947
  %1303 = vst.msk [vmem:[%s2 + $0x240] sm:$0xff] %vm1230, %v952
  %1304 = vst.msk [vmem:[%s2 + $0x248] sm:$0xff] %vm1230, %v957
  %1305 = vst.msk [vmem:[%s2 + $0x250] sm:$0xff] %vm1230, %v962
  %1306 = vst.msk [vmem:[%s2 + $0x258] sm:$0xff] %vm1230, %v967
  %1307 = vst.msk [vmem:[%s2 + $0x260] sm:$0xff] %vm1230, %v972
  %1308 = vst.msk [vmem:[%s2 + $0x268] sm:$0xff] %vm1230, %v977
  %1309 = vst.msk [vmem:[%s2 + $0x270] sm:$0xff] %vm1230, %v982
  %1310 = vst.msk [vmem:[%s2 + $0x278] sm:$0xff] %vm1230, %v987
  %1311 = vst.msk [vmem:[%s2 + $0x280] sm:$0xff] %vm1230, %v992
  %1312 = vst.msk [vmem:[%s2 + $0x288] sm:$0xff] %vm1230, %v997
  %1313 = vst.msk [vmem:[%s2 + $0x290] sm:$0xff] %vm1230, %v1002
  %1314 = vst.msk [vmem:[%s2 + $0x298] sm:$0xff] %vm1230, %v1007
  %1315 = vst.msk [vmem:[%s2 + $0x2a0] sm:$0xff] %vm1230, %v1012
  %1316 = vst.msk [vmem:[%s2 + $0x2a8] sm:$0xff] %vm1230, %v1017
  %1317 = vst.msk [vmem:[%s2 + $0x2b0] sm:$0xff] %vm1230, %v1022
  %1318 = vst.msk [vmem:[%s2 + $0x2b8] sm:$0xff] %vm1230, %v1027
  %1319 = vst.msk [vmem:[%s2 + $0x2c0] sm:$0xff] %vm1230, %v1032
  %1320 = vst.msk [vmem:[%s2 + $0x2c8] sm:$0xff] %vm1230, %v1037
  %1321 = vst.msk [vmem:[%s2 + $0x2d0] sm:$0xff] %vm1230, %v1042
  %1322 = vst.msk [vmem:[%s2 + $0x2d8] sm:$0xff] %vm1230, %v1047
  %1323 = vst.msk [vmem:[%s2 + $0x2e0] sm:$0xff] %vm1230, %v1052
  %1324 = vst.msk [vmem:[%s2 + $0x2e8] sm:$0xff] %vm1230, %v1057
  %1325 = vst.msk [vmem:[%s2 + $0x2f0] sm:$0xff] %vm1230, %v1062
  %1326 = vst.msk [vmem:[%s2 + $0x2f8] sm:$0xff] %vm1230, %v1067
  %1327 = vst.msk [vmem:[%s2 + $0x300] sm:$0xff] %vm1230, %v1072
  %1328 = vst.msk [vmem:[%s2 + $0x308] sm:$0xff] %vm1230, %v1077
  %1329 = vst.msk [vmem:[%s2 + $0x310] sm:$0xff] %vm1230, %v1082
  %1330 = vst.msk [vmem:[%s2 + $0x318] sm:$0xff] %vm1230, %v1087
  %1331 = vst.msk [vmem:[%s2 + $0x320] sm:$0xff] %vm1230, %v1092
  %1332 = vst.msk [vmem:[%s2 + $0x328] sm:$0xff] %vm1230, %v1097
  %1333 = vst.msk [vmem:[%s2 + $0x330] sm:$0xff] %vm1230, %v1102
  %1334 = vst.msk [vmem:[%s2 + $0x338] sm:$0xff] %vm1230, %v1107
  %1335 = vst.msk [vmem:[%s2 + $0x340] sm:$0xff] %vm1230, %v1112
  %1336 = vst.msk [vmem:[%s2 + $0x348] sm:$0xff] %vm1230, %v1117
  %1337 = vst.msk [vmem:[%s2 + $0x350] sm:$0xff] %vm1230, %v1122
  %1338 = vst.msk [vmem:[%s2 + $0x358] sm:$0xff] %vm1230, %v1127
  %1339 = vst.msk [vmem:[%s2 + $0x360] sm:$0xff] %vm1230, %v1132
  %1340 = vst.msk [vmem:[%s2 + $0x368] sm:$0xff] %vm1230, %v1137
  %1341 = vst.msk [vmem:[%s2 + $0x370] sm:$0xff] %vm1230, %v1142
  %1342 = vst.msk [vmem:[%s2 + $0x378] sm:$0xff] %vm1230, %v1147
  %1343 = vst.msk [vmem:[%s2 + $0x380] sm:$0xff] %vm1230, %v1152
  %1344 = vst.msk [vmem:[%s2 + $0x388] sm:$0xff] %vm1230, %v1157
  %1345 = vst.msk [vmem:[%s2 + $0x390] sm:$0xff] %vm1230, %v1162
  %1346 = vst.msk [vmem:[%s2 + $0x398] sm:$0xff] %vm1230, %v1167
  %1347 = vst.msk [vmem:[%s2 + $0x3a0] sm:$0xff] %vm1230, %v1172
  %1348 = vst.msk [vmem:[%s2 + $0x3a8] sm:$0xff] %vm1230, %v1177
  %1349 = vst.msk [vmem:[%s2 + $0x3b0] sm:$0xff] %vm1230, %v1182
  %1350 = vst.msk [vmem:[%s2 + $0x3b8] sm:$0xff] %vm1230, %v1187
  %1351 = vst.msk [vmem:[%s2 + $0x3c0] sm:$0xff] %vm1230, %v1192
  %1352 = vst.msk [vmem:[%s2 + $0x3c8] sm:$0xff] %vm1230, %v1197
  %1353 = vst.msk [vmem:[%s2 + $0x3d0] sm:$0xff] %vm1230, %v1202
  %1354 = vst.msk [vmem:[%s2 + $0x3d8] sm:$0xff] %vm1230, %v1207
  %1355 = vst.msk [vmem:[%s2 + $0x3e0] sm:$0xff] %vm1230, %v1212
  %1356 = vst.msk [vmem:[%s2 + $0x3e8] sm:$0xff] %vm1230, %v1217
  %1357 = vst.msk [vmem:[%s2 + $0x3f0] sm:$0xff] %vm1230, %v1222
  %1358 = vst.msk [vmem:[%s2 + $0x3f8] sm:$0xff] %vm1230, %v1227
  // Predicated region
  $region10: #{tpu_custom_call.1} parent=0 // pred_check
    _
  $region11: #{tpu_custom_call.1} parent=0 // pred_check_branch
    %1360 = sbr.rel (0) target = $region13
  $region12: #{tpu_custom_call.1} parent=0 // pred_region
    _
  $region13: #{tpu_custom_call.1} parent=0 // pred_fallthru
    _
  // Predicated region
  $region14: #{tpu_custom_call.1} parent=0 // pred_check
    _
  $region15: #{tpu_custom_call.1} parent=0 // pred_check_branch
    %1362 = sbr.rel (0) target = $region17
  $region16: #{tpu_custom_call.1} parent=0 // pred_region
    _
  $region17: #{tpu_custom_call.1} parent=0 // pred_fallthru
    _

</llo_original>
